<compile_context>
chip_gen: v6e
topology: v6e:2x2x1
jax: 0.10.0
libtpu: 0.0.40
codegen_flags: <defaults>
</compile_context>

<pallas_src>
import math

import numpy as np

import jax
import jax.numpy as jnp
from jax import lax
from jax.experimental import pallas as pl
from jax.experimental.pallas import tpu as pltpu

_NEG_INF = -1e30  # big-but-finite mask value avoids inf-inf NaN corner cases


# ---------------------------------------------------------------------------
# Kernel 1: qkv = x @ W_attn^T + b_attn   (rows x output-cols tiled, bf16 MXU)
# ---------------------------------------------------------------------------
def _qkv_proj_kernel(x_ref, w_ref, b_ref, o_ref):
    # x_ref: (TM, C) f32, w_ref: (C, TN) bf16, b_ref: (1, TN) f32, o_ref: (TM, TN) bf16
    x = x_ref[...].astype(jnp.bfloat16)
    acc = jnp.dot(x, w_ref[...], preferred_element_type=jnp.float32)
    o_ref[...] = (acc + b_ref[...]).astype(o_ref.dtype)


# ---------------------------------------------------------------------------
# Kernel 2: triangular flash attention (online softmax) + fused c_proj
# ---------------------------------------------------------------------------
def _make_flash_attn_proj_kernel(n_head, hd, tq, tk, exp_dtype):
    def kernel(qi_ids, h_ids, kv_ids, lk_ids,            # scalar-prefetch (SMEM)
               q_ref, k_ref, v_ref, wproj_ref, bproj_ref, o_ref,
               m_ref, l_ref, acc_ref, ybuf_ref):
        # q_ref: (1,1,tq,hd) bf16 (scale pre-folded), k/v_ref: (1,1,tk,hd) bf16
        # wproj_ref: (C,C) bf16 (constant index), bproj_ref: (1,C) f32
        # o_ref: (1,tq,C); scratch: m/l (tq,1) f32, acc (tq,hd) f32, ybuf (tq,C) bf16
        p = pl.program_id(1)
        qi = qi_ids[p]
        h = h_ids[p]
        kv = kv_ids[p]
        last_kv = lk_ids[p]

        q_start = qi * tq
        kv_start = kv * tk

        # Reset the per-head flash state on this head's first KV block.
        @pl.when(kv == 0)
        def _():
            m_ref[...] = jnp.full_like(m_ref, _NEG_INF)
            l_ref[...] = jnp.zeros_like(l_ref)
            acc_ref[...] = jnp.zeros_like(acc_ref)

        q = q_ref[0, 0]
        k = k_ref[0, 0]
        v = v_ref[0, 0]

        # q @ k^T without a materialized transpose (contract the head dim).
        s = lax.dot_general(q, k, (((1,), (1,)), ((), ())),
                            preferred_element_type=jnp.float32)   # (tq, tk) f32

        def online_softmax(s_blk):
            m_prev = m_ref[...]
            m_new = jnp.maximum(m_prev, jnp.max(s_blk, axis=-1, keepdims=True))
            alpha = jnp.exp(m_prev - m_new)
            # exp argument in bf16 on v6e/v7x (EUP bf16 path); f32 on v5e.
            p_ = jnp.exp((s_blk - m_new).astype(exp_dtype))
            l_ref[...] = alpha * l_ref[...] + jnp.sum(
                p_.astype(jnp.float32), axis=-1, keepdims=True)
            acc_ref[...] = alpha * acc_ref[...] + jnp.dot(
                p_.astype(jnp.bfloat16), v, preferred_element_type=jnp.float32)
            m_ref[...] = m_new

        # Only diagonal-straddling blocks need the causal mask; the triangular
        # schedule never emits blocks fully above the diagonal, and blocks fully
        # below it take the mask-free path (no iota/compare/select work).
        needs_mask = kv_start + tk - 1 > q_start

        @pl.when(needs_mask)
        def _():
            row = q_start + lax.broadcasted_iota(jnp.int32, (tq, tk), 0)
            col = kv_start + lax.broadcasted_iota(jnp.int32, (tq, tk), 1)
            online_softmax(jnp.where(col <= row, s, _NEG_INF))

        @pl.when(jnp.logical_not(needs_mask))
        def _():
            online_softmax(s)

        # Head finished: normalize and stash its slab into the packed (tq, C)
        # buffer.  Static unroll keeps the lane offset static (safe masked
        # stores); only one branch executes per step.
        @pl.when(kv == last_kv)
        def _():
            inv_l = pl.reciprocal(l_ref[...], approx=True)            # EUP slot
            head_out = (acc_ref[...] * inv_l).astype(jnp.bfloat16)    # (tq, hd)
            for hh in range(n_head):
                @pl.when(h == hh)
                def _(hh=hh):
                    ybuf_ref[:, hh * hd:(hh + 1) * hd] = head_out

        # All heads done for this (b, qi): one K=C output projection + bias.
        @pl.when(jnp.logical_and(h == n_head - 1, kv == last_kv))
        def _():
            y = jnp.dot(ybuf_ref[...], wproj_ref[...],
                        preferred_element_type=jnp.float32)           # (tq, C)
            o_ref[0] = (y + bproj_ref[...]).astype(o_ref.dtype)

    return kernel


# ---------------------------------------------------------------------------
# Wrapper
# ---------------------------------------------------------------------------
def _row_tile(n, preferred):
    """Largest tile <= preferred that divides n (second-to-last dims: mult of 8)."""
    if n <= preferred:
        return n
    t = (preferred // 8) * 8
    while t >= 8:
        if n % t == 0:
            return t
        t -= 8
    return n   # fallback: full extent (no pipelining along this dim)


def _lane_tile(n, preferred):
    """Largest tile <= preferred that divides n (lane dims: multiple of 128)."""
    if n <= preferred:
        return n
    t = (preferred // 128) * 128
    while t >= 128:
        if n % t == 0:
            return t
        t -= 128
    return n


def _default_exp_dtype():
    # bf16 EUP exists on v6e/v7x; keep f32 softmax math on v5e and older.
    try:
        kind = jax.devices()[0].device_kind.lower()
    except Exception:
        kind = ""
    return jnp.bfloat16 if ("v6" in kind or "v7" in kind) else jnp.float32


def causal_self_attention(x, w_attn, b_attn, w_proj, b_proj, n_head,
                          block_q=512, block_k=512, block_m=256, block_n=1152,
                          exp_dtype=None):
    """x: (B, T, C); w_attn: (3C, C); b_attn: (3C,); w_proj: (C, C); b_proj: (C,)."""
    B, T, C = x.shape
    assert C % n_head == 0
    hd = C // n_head
    if exp_dtype is None:
        exp_dtype = _default_exp_dtype()

    # Fold the softmax scale 1/sqrt(hd) into the q-rows of the QKV projection so
    # the attention kernel never touches it (free; applied to the weights once).
    # TODO(synk): store weights pre-transposed / pre-cast if they are live
    # parameters fed every step (these transposes re-run per call under jit).
    scale = 1.0 / math.sqrt(hd)
    col_scale = jnp.concatenate([jnp.full((C,), scale, jnp.float32),
                                 jnp.ones((2 * C,), jnp.float32)])
    wqkv = (w_attn.astype(jnp.float32) * col_scale[:, None]).T.astype(jnp.bfloat16)  # (C,3C)
    bqkv = (b_attn.astype(jnp.float32) * col_scale).reshape(1, 3 * C)                # f32
    wproj = w_proj.T.astype(jnp.bfloat16)                                            # (C,C)
    bproj = b_proj.reshape(1, C).astype(jnp.float32)

    # ---- Kernel 1: QKV projection -------------------------------------------
    BT = B * T
    tm = _row_tile(BT, block_m)
    tn = _lane_tile(3 * C, block_n)
    qkv = pl.pallas_call(
        _qkv_proj_kernel,
        out_shape=jax.ShapeDtypeStruct((BT, 3 * C), jnp.bfloat16),
        grid_spec=pltpu.PrefetchScalarGridSpec(
            num_scalar_prefetch=0,
            grid=(BT // tm, 3 * C // tn),
            in_specs=[
                pl.BlockSpec((tm, C), lambda i, j: (i, 0)),   # x rows
                pl.BlockSpec((C, tn), lambda i, j: (0, j)),   # W_attn^T column tile
                pl.BlockSpec((1, tn), lambda i, j: (0, j)),   # bias column tile
            ],
            out_specs=pl.BlockSpec((tm, tn), lambda i, j: (i, j)),
        ),
        compiler_params=pltpu.CompilerParams(
            dimension_semantics=("parallel", "parallel")),
    )(x.reshape(BT, C), wqkv, bqkv)

    # Canonical 3-way split + head split (== PyTorch view().transpose(1,2)).
    qkv = qkv.reshape(B, T, 3, n_head, hd).transpose(2, 0, 3, 1, 4)  # (3,B,nh,T,hd)
    q, k, v = qkv[0], qkv[1], qkv[2]                                 # bf16

    # ---- Kernel 2: triangular flash attention + fused c_proj ----------------
    tq = _row_tile(T, block_q)
    tk = _row_tile(T, block_k)
    n_q = T // tq

    # Flat (qi, head, kv) schedule enumerating only causally-needed KV blocks.
    qi_l, h_l, kv_l, lk_l = [], [], [], []
    for qi in range(n_q):
        last_kv = (qi * tq + tq - 1) // tk
        for h in range(n_head):
            for kv in range(last_kv + 1):
                qi_l.append(qi)
                h_l.append(h)
                kv_l.append(kv)
                lk_l.append(last_kv)
    n_steps = len(qi_l)
    qi_ids = jnp.asarray(np.asarray(qi_l, dtype=np.int32))
    h_ids = jnp.asarray(np.asarray(h_l, dtype=np.int32))
    kv_ids = jnp.asarray(np.asarray(kv_l, dtype=np.int32))
    lk_ids = jnp.asarray(np.asarray(lk_l, dtype=np.int32))

    kernel = _make_flash_attn_proj_kernel(n_head, hd, tq, tk, exp_dtype)

    def q_map(b, p, qi_r, h_r, kv_r, lk_r):
        return (b, h_r[p], qi_r[p], 0)          # resident across a head's kv run

    def kv_map(b, p, qi_r, h_r, kv_r, lk_r):
        return (b, h_r[p], kv_r[p], 0)

    def w_map(b, p, qi_r, h_r, kv_r, lk_r):
        return (0, 0)                           # constant index -> DMA'd once

    def o_map(b, p, qi_r, h_r, kv_r, lk_r):
        return (b, qi_r[p], 0)                  # changes only when qi changes

    out = pl.pallas_call(
        kernel,
        out_shape=jax.ShapeDtypeStruct((B, T, C), x.dtype),
        grid_spec=pltpu.PrefetchScalarGridSpec(
            num_scalar_prefetch=4,
            grid=(B, n_steps),
            in_specs=[
                pl.BlockSpec((1, 1, tq, hd), q_map),
                pl.BlockSpec((1, 1, tk, hd), kv_map),
                pl.BlockSpec((1, 1, tk, hd), kv_map),
                pl.BlockSpec((C, C), w_map),
                pl.BlockSpec((1, C), w_map),
            ],
            out_specs=pl.BlockSpec((1, tq, C), o_map),
            scratch_shapes=[
                pltpu.VMEM((tq, 1), jnp.float32),    # running max
                pltpu.VMEM((tq, 1), jnp.float32),    # running denom
                pltpu.VMEM((tq, hd), jnp.float32),   # per-head accumulator
                pltpu.VMEM((tq, C), jnp.bfloat16),   # packed heads for c_proj
            ],
        ),
        compiler_params=pltpu.CompilerParams(
            dimension_semantics=("parallel", "arbitrary")),
    )(qi_ids, h_ids, kv_ids, lk_ids, q, k, v, wproj, bproj)
    return out


# ---------------------------------------------------------------------------
# Plain-JAX reference (canonical split), f32
# ---------------------------------------------------------------------------
def reference_attention(x, w_attn, b_attn, w_proj, b_proj, n_head):
    B, T, C = x.shape
    hd = C // n_head
    qkv = x @ w_attn.T + b_attn
    q, k, v = jnp.split(qkv, 3, axis=2)
    q = q.reshape(B, T, n_head, hd).transpose(0, 2, 1, 3)
    k = k.reshape(B, T, n_head, hd).transpose(0, 2, 1, 3)
    v = v.reshape(B, T, n_head, hd).transpose(0, 2, 1, 3)
    att = (q @ jnp.swapaxes(k, -2, -1)) * (1.0 / math.sqrt(hd))
    mask = jnp.tril(jnp.ones((T, T), dtype=bool))
    att = jnp.where(mask[None, None], att, -jnp.inf)
    att = jax.nn.softmax(att, axis=-1)
    y = att @ v
    y = y.transpose(0, 2, 1, 3).reshape(B, T, C)
    return y @ w_proj.T + b_proj


def _make_params(key, C, n_head):
    kw1, kb1, kw2, kb2 = jax.random.split(key, 4)
    bound = 1.0 / math.sqrt(C)
    w_attn = jax.random.uniform(kw1, (3 * C, C), jnp.float32, -bound, bound)
    b_attn = jax.random.uniform(kb1, (3 * C,), jnp.float32, -bound, bound)
    w_proj = jax.random.uniform(kw2, (C, C), jnp.float32, -bound, bound)
    b_proj = jax.random.uniform(kb2, (C,), jnp.float32, -bound, bound)
    return w_attn, b_attn, w_proj, b_proj


if __name__ == "__main__":
    key = jax.random.PRNGKey(0)

    # Test 1: tiny GPT-2-like config (single KV block; diagonal mask path).
    B, T, C, n_head = 2, 8, 32, 4
    k1, k2, key = jax.random.split(key, 3)
    x = jax.random.normal(k1, (B, T, C), dtype=jnp.float32)
    w_attn, b_attn, w_proj, b_proj = _make_params(k2, C, n_head)
    out = jax.block_until_ready(
        causal_self_attention(x, w_attn, b_attn, w_proj, b_proj, n_head))
    ref = reference_attention(x, w_attn, b_attn, w_proj, b_proj, n_head)
    assert out.shape == (B, T, C)
    # bf16 matmul operands + approx reciprocal -> loose tolerance vs f32 ref.
    assert jnp.allclose(out, ref, atol=5e-2, rtol=5e-2), "mismatch vs reference (test 1)"

    # Test 2: multi-block triangular schedule with tq != tk (exercises the
    # straddling-mask / mask-free paths, multi-head packing, K=C c_proj).
    B2, T2, C2, nh2 = 2, 128, 64, 4
    k3, k4 = jax.random.split(key)
    x2 = jax.random.normal(k3, (B2, T2, C2), dtype=jnp.float32)
    w_attn2, b_attn2, w_proj2, b_proj2 = _make_params(k4, C2, nh2)
    out2 = jax.block_until_ready(
        causal_self_attention(x2, w_attn2, b_attn2, w_proj2, b_proj2, nh2,
                              block_q=32, block_k=16))
    ref2 = reference_attention(x2, w_attn2, b_attn2, w_proj2, b_proj2, nh2)
    assert out2.shape == (B2, T2, C2)
    assert jnp.allclose(out2, ref2, atol=5e-2, rtol=5e-2), "mismatch vs reference (test 2)"

    print("KERNEL_OK")
</pallas_src>

<mosaic_0001>
module attributes {stable_mosaic.version = 11 : i64} {
  func.func @_qkv_proj_kernel(%arg0: i32, %arg1: i32, %arg2: memref<16x32xf32, #tpu.memory_space<vmem>>, %arg3: memref<32x96xbf16, #tpu.memory_space<vmem>>, %arg4: memref<1x96xf32, #tpu.memory_space<vmem>>, %arg5: memref<16x96xbf16, #tpu.memory_space<vmem>>) attributes {dimension_semantics = [#tpu.dimension_semantics<parallel>, #tpu.dimension_semantics<parallel>], iteration_bounds = array<i64: 1, 1>, scalar_prefetch = 0 : i64, scratch_operands = 0 : i64, tpu.core_type = #tpu.core_type<tc>, window_params = [{transform_indices = @transform_0, window_bounds = array<i64: 16, 32>}, {transform_indices = @transform_1, window_bounds = array<i64: 32, 96>}, {transform_indices = @transform_2, window_bounds = array<i64: 1, 96>}, {transform_indices = @transform_3, window_bounds = array<i64: 16, 96>}]} {
    %c0 = arith.constant 0 : index
    %c0_0 = arith.constant 0 : index
    %0 = vector.load %arg2[%c0, %c0_0] : memref<16x32xf32, #tpu.memory_space<vmem>>, vector<16x32xf32>
    %1 = arith.truncf %0 : vector<16x32xf32> to vector<16x32xbf16>
    %c0_1 = arith.constant 0 : index
    %c0_2 = arith.constant 0 : index
    %2 = vector.load %arg3[%c0_1, %c0_2] : memref<32x96xbf16, #tpu.memory_space<vmem>>, vector<32x96xbf16>
    %cst = arith.constant dense<0.000000e+00> : vector<16x96xf32>
    %3 = tpu.matmul %1, %2, %cst {dimension_numbers = #tpu.dot_dimension_numbers<[1], [0], [0], [1], [0, 0, 1, 1], [], []>} : vector<16x32xbf16>, vector<32x96xbf16>, vector<16x96xf32> -> vector<16x96xf32>
    %c0_3 = arith.constant 0 : index
    %c0_4 = arith.constant 0 : index
    %4 = vector.load %arg4[%c0_3, %c0_4] : memref<1x96xf32, #tpu.memory_space<vmem>>, vector<1x96xf32>
    %5 = vector.broadcast %4 : vector<1x96xf32> to vector<16x96xf32>
    %6 = arith.addf %3, %5 : vector<16x96xf32>
    %7 = arith.truncf %6 : vector<16x96xf32> to vector<16x96xbf16>
    %c0_5 = arith.constant 0 : index
    %c0_6 = arith.constant 0 : index
    %8 = vector.load %arg5[%c0_5, %c0_6] : memref<16x96xbf16, #tpu.memory_space<vmem>>, vector<16x96xbf16>
    tpu.vector_store %arg5[%c0_5, %c0_6], %7 {strides = array<i32>} : memref<16x96xbf16, #tpu.memory_space<vmem>>, vector<16x96xbf16>,
    return
  }
  func.func @transform_0(%arg0: i32, %arg1: i32) -> (i32, i32) {
    %c0_i32 = arith.constant 0 : i32
    %c0_i32_0 = arith.constant 0 : i32
    return %arg0, %c0_i32 : i32, i32
  }
  func.func @transform_1(%arg0: i32, %arg1: i32) -> (i32, i32) {
    %c0_i32 = arith.constant 0 : i32
    %c0_i32_0 = arith.constant 0 : i32
    return %c0_i32, %arg1 : i32, i32
  }
  func.func @transform_2(%arg0: i32, %arg1: i32) -> (i32, i32) {
    %c0_i32 = arith.constant 0 : i32
    %c0_i32_0 = arith.constant 0 : i32
    return %c0_i32, %arg1 : i32, i32
  }
  func.func @transform_3(%arg0: i32, %arg1: i32) -> (i32, i32) {
    %c0_i32 = arith.constant 0 : i32
    return %arg0, %arg1 : i32, i32
  }
}

</mosaic_0001>

<llo_original>
// kernel: tpu_custom_call.1
$region0: #{tpu_custom_call.1}
  #allocation0 [shape = 'u32[]', space=smem, size = 0x4, offset = 0x4, fixed_abs, tag = 'smem constant byte address 0x4 - core index']
  #allocation1 [shape = 'u32[144,128]{1,0:T(1,128)}', space=vmem, size = 0x12000, scoped, tag = 'internal scratch']
  %s0 = inlined_call_operand.hbm [shape: f32[16,32], index: 0, kind: input, shape index: {}]
  %s1 = inlined_call_operand.hbm [shape: bf16[32,96], index: 1, kind: input, shape index: {}]
  %s2 = inlined_call_operand.vmem [shape: f32[1,96], index: 2, kind: input, shape index: {}]
  %s3 = inlined_call_operand.hbm [shape: bf16[16,96], index: 3, kind: output, shape index: {}]
  %s4 = sld [smem:[#allocation0]]
  $region30: #{tpu_custom_call.1} parent=0
    _
  %s6 = ssub.s32 1, %s4
  %s7 = scalar_select 0, %s6, %s4
  $region1: #{tpu_custom_call.1} parent=0
    #allocation2 [shape = 'u8[8192]{0}', space=vmem, size = 0x2000, scoped, tag = 'input window, operand 0, single buffered']
    #allocation3 [shape = 's32[1]{0}', space=sflag, size = 0x4, scoped, tag = 'scoped memory for tpu_custom_call.1']
    #allocation4 [shape = 's32[1]{0}', space=sflag, size = 0x4, scoped, tag = 'scoped memory for tpu_custom_call.1']
    #allocation5 [shape = 'u8[8192]{0}', space=vmem, size = 0x2000, scoped, tag = 'input window, operand 1, single buffered']
    #allocation6 [shape = 's32[1]{0}', space=sflag, size = 0x4, scoped, tag = 'scoped memory for tpu_custom_call.1']
    #allocation7 [shape = 'u8[4096]{0}', space=vmem, size = 0x1000, scoped, tag = 'output window, operand 0, single buffered']
    %8 = vsyncpa [#allocation3], 0
    %9 = vsyncpa [#allocation6], 0
    %10 = vsyncpa [#allocation4], 0
    // Predicated region
    $region2: #{tpu_custom_call.1} parent=1 // pred_check
      _
    $region3: #{tpu_custom_call.1} parent=1 // pred_check_branch
      %12 = sbr.rel (0) target = $region5
    $region4: #{tpu_custom_call.1} parent=1 // pred_region
      %s14 = ssub.s32 256, 256
      %15 = vsyncadd [#allocation3], %s14
      %s16 = sshll.u32 [#allocation2], 4
      %s17 = int_to_ptr.vmem [resolvable:$true] %s16
      %22 = dma.hbm_to_vmem [thread:$0]  %s0, 256, %s17, [#allocation3], 128, 128, 8
    $region5: #{tpu_custom_call.1} parent=1 // pred_fallthru
      _
    // Predicated region
    $region6: #{tpu_custom_call.1} parent=1 // pred_check
      _
    $region7: #{tpu_custom_call.1} parent=1 // pred_check_branch
      %24 = sbr.rel (0) target = $region9
    $region8: #{tpu_custom_call.1} parent=1 // pred_region
      %s26 = ssub.s32 256, 256
      %27 = vsyncadd [#allocation6], %s26
      %s28 = sshll.u32 [#allocation5], 4
      %s29 = int_to_ptr.vmem [resolvable:$true] %s28
      %34 = dma.hbm_to_vmem [thread:$0]  %s1, 256, %s29, [#allocation6], 64, 64, 4
    $region9: #{tpu_custom_call.1} parent=1 // pred_fallthru
      _
    // Predicated region
    $region10: #{tpu_custom_call.1} parent=1 // pred_check
      _
    $region11: #{tpu_custom_call.1} parent=1 // pred_check_branch
      %36 = sbr.rel (0) target = $region13
    $region12: #{tpu_custom_call.1} parent=1 // pred_region
      _
    $region13: #{tpu_custom_call.1} parent=1 // pred_fallthru
      _
    // Predicated region
    $region14: #{tpu_custom_call.1} parent=1 // pred_check
      _
    $region15: #{tpu_custom_call.1} parent=1 // pred_check_branch
      %38 = sbr.rel (0) target = $region17
    $region16: #{tpu_custom_call.1} parent=1 // pred_region
      %39 = dma.done [#allocation3], 256
    $region17: #{tpu_custom_call.1} parent=1 // pred_fallthru
      _
    // Predicated region
    $region18: #{tpu_custom_call.1} parent=1 // pred_check
      _
    $region19: #{tpu_custom_call.1} parent=1 // pred_check_branch
      %41 = sbr.rel (0) target = $region21
    $region20: #{tpu_custom_call.1} parent=1 // pred_region
      %42 = dma.done [#allocation6], 256
    $region21: #{tpu_custom_call.1} parent=1 // pred_fallthru
      _
    %v44 = vld [vmem:[#allocation2] sm:$0xff]
    %v45 = vld [vmem:[#allocation2 + $0x8] sm:$0xff]
    %v46 = vpack.c.bf16 %v45, %v44
    %v47 = vld [vmem:[#allocation5] sm:$0xf]
    %v48 = vld [vmem:[#allocation5 + $0x4] sm:$0xf]
    %v49 = vld [vmem:[#allocation5 + $0x8] sm:$0xf]
    %v50 = vld [vmem:[#allocation5 + $0xc] sm:$0xf]
    %v51 = vld [vmem:[%s2] sm:$0x1]
    %v53 = vlaneseq
    %v54 = vshrl.u32 %v53, 7
    %v55 = vsub.s32 0, %v54
    %v56 = vrot.slane %v51, %v55
    %v62 = vunpack.c.l.b16 %v47
    %v63 = vunpack.c.l.b16 %v48
    %v64 = vunpack.c.l.b16 %v49
    %v65 = vunpack.c.l.b16 %v50
    %v66 = vpack.c.b16 %v63, %v62
    %v67 = vpack.c.b16 %v65, %v64
    %vm70 = vcmask 261120
    %v72 = vsel %vm70, %v46, 0
    %74 = vmatprep.subr.bf16.mxu0 0
    %75 = vmatpush1.bf16.msra.mxu0 0
    %76 = vmatprep.subr.bf16.mxu0 0
    %77 = vmatpush1.bf16.msra.mxu0 0
    %78 = vmatprep.subr.bf16.mxu0 0
    %79 = vmatpush1.bf16.msra.mxu0 0
    %80 = vmatprep.subr.bf16.mxu0 0
    %81 = vmatpush1.bf16.msra.mxu0 0
    %82 = vmatprep.subr.bf16.mxu0 0
    %83 = vmatpush1.bf16.msra.mxu0 0
    %84 = vmatprep.subr.bf16.mxu0 0
    %85 = vmatpush1.bf16.msra.mxu0 0
    %86 = vmatprep.subr.bf16.mxu0 0
    %87 = vmatpush1.bf16.msra.mxu0 %v67
    %88 = vmatprep.subr.bf16.mxu0 0
    %89 = vmatpush1.bf16.msra.mxu0 %v66
    %90 = vmatprep.subr.bf16.mxu0 0
    %91 = vmatpush2.bf16.msra.mxu0 0
    %92 = vmatprep.subr.bf16.mxu0 0
    %93 = vmatpush2.bf16.msra.mxu0 0
    %94 = vmatprep.subr.bf16.mxu0 0
    %95 = vmatpush2.bf16.msra.mxu0 0
    %96 = vmatprep.subr.bf16.mxu0 0
    %97 = vmatpush2.bf16.msra.mxu0 0
    %98 = vmatprep.subr.bf16.mxu0 0
    %99 = vmatpush2.bf16.msra.mxu0 0
    %100 = vmatprep.subr.bf16.mxu0 0
    %101 = vmatpush2.bf16.msra.mxu0 0
    %102 = vmatprep.subr.bf16.mxu0 0
    %103 = vmatpush2.bf16.msra.mxu0 0
    %104 = vmatprep.subr.bf16.mxu0 0
    %105 = vmatpush2.bf16.msra.mxu0 0
    %106 = vmatprep.mubr.bf16.mxu0 0
    %107 = vmatmul.mubr.bf16.gmra.mxu0 %v72
    %v108 = vpop.f32.mrf.mxu0
    %v109 = vadd.f32 %v56, %v108
    %v110 = vpop.f32.mrf.mxu0
    %v111 = vpop.f32.mrf.mxu0
    %v112 = vadd.f32 %v56, %v111
    %v113 = vpop.f32.mrf.mxu0
    %114 = vdwg.mxu0
    %v115 = vpack.c.bf16 %v112, %v109
    %v117 = vunpack.c.l.b16 %v115
    %v118 = vunpack.c.h.b16 %v115
    %v119 = vpack.c.b16 %v117, %v117
    %v120 = vpack.c.b16 %v118, %v118
    %vm123 = vcmask 781312
    %124 = vst.msk [vmem:[#allocation7] sm:$0xf] %vm123, %v119
    %125 = vst.msk [vmem:[#allocation7 + $0x4] sm:$0xf] %vm123, %v120
    // Predicated region
    $region22: #{tpu_custom_call.1} parent=1 // pred_check
      _
    $region23: #{tpu_custom_call.1} parent=1 // pred_check_branch
      %127 = sbr.rel (0) target = $region25
    $region24: #{tpu_custom_call.1} parent=1 // pred_region
      %s129 = ssub.s32 128, 128
      %130 = vsyncadd [#allocation4], %s129
      %s131 = sshll.u32 [#allocation7], 4
      %s132 = int_to_ptr.vmem [resolvable:$true] %s131
      %137 = dma.vmem_to_hbm [thread:$0]  %s132, 128, %s3, [#allocation4], 64, 64, 4
    $region25: #{tpu_custom_call.1} parent=1 // pred_fallthru
      _
    // Predicated region
    $region26: #{tpu_custom_call.1} parent=1 // pred_check
      _
    $region27: #{tpu_custom_call.1} parent=1 // pred_check_branch
      %139 = sbr.rel (0) target = $region29
    $region28: #{tpu_custom_call.1} parent=1 // pred_region
      %140 = dma.done [#allocation4], 128
    $region29: #{tpu_custom_call.1} parent=1 // pred_fallthru
      _
    %141 = vsyncpa [#allocation3], 1
    %142 = vsyncpa [#allocation6], 1
    %143 = vsyncpa [#allocation4], 1

</llo_original>
